<compile_context>
chip_gen: v5e
topology: v5e:2x2
jax: 0.10.0
libtpu: 0.0.40
codegen_flags: <defaults>
</compile_context>

<pallas_src>
import functools
import math

import jax
import jax.numpy as jnp
from jax import lax
from jax.experimental import pallas as pl
from jax.experimental.pallas import tpu as pltpu

_LANES = 512                   # lane-dense slab width (multiple of 128)
_ELEM_BLOCK_BYTES = 4 << 20    # target f32 output block, elementwise path
_REDUCE_STEP_BYTES = 16 << 20  # target per-grid-step input traffic, reductions
_NUM_SPLITS = 2                # leading "parallel" axis -> both v7x TensorCores

_NATIVE_DTYPES = frozenset(
    jnp.dtype(d) for d in (jnp.float32, jnp.bfloat16, jnp.float16, jnp.int32))


def _sublanes(dtype):
    return max(8, 32 // jnp.dtype(dtype).itemsize)


def _round_down(x, m):
    return max(m, (x // m) * m)


def _maybe_precast(x):
    x = jnp.asarray(x)
    if jnp.dtype(x.dtype) in _NATIVE_DTYPES:
        return x  # f32 cast happens inside the kernel (narrow HBM reads)
    return x.astype(jnp.float32)


def _pack_2d(x, row_align):
    """Flatten x into a lane-dense (rows, _LANES) slab; rows % row_align == 0.

    Pads (one extra HBM copy) only when the flat length is not already a
    multiple of row_align * _LANES.
    """
    flat = x.reshape(-1)
    n = flat.shape[0]
    align = row_align * _LANES
    if n % align == 0:
        return flat.reshape(n // _LANES, _LANES)
    rows = ((n + align - 1) // align) * row_align
    flat = jnp.pad(flat, (0, rows * _LANES - n))
    return flat.reshape(rows, _LANES)


def _vmem_limit(step_bytes):
    # double-buffered working set + headroom; floor above v5e's 16 MiB scoped
    # default, ceiling below v7x's 64 MiB physical VMEM.
    return int(min(56 << 20, max(32 << 20, 2 * step_bytes + (4 << 20))))


# ---------------------------------------------------------------------------
# kernels
# ---------------------------------------------------------------------------

def _rmse_elementwise_kernel(eps, yp_ref, yt_ref, o_ref):
    # reduction='none': per-element sqrt((yp - yt)^2 + eps), computed in f32.
    d = yp_ref[...].astype(jnp.float32) - yt_ref[...].astype(jnp.float32)
    o_ref[...] = jnp.sqrt(d * d + eps)


def _reduce_kernel(eps, n_valid, nt, weighted, may_mask, *refs):
    """Accumulates sum(d^2) (unweighted) or sum(w * sqrt(d^2 + eps)) (weighted).

    Output block (8, _LANES) is resident across the 'arbitrary' tile axis;
    lane-wise partial sums land in row 0 (sublane reduce only per tile); the
    cross-lane reduce happens once in the JAX epilogue.
    """
    if weighted:
        w_ref, yp_ref, yt_ref, o_ref = refs
    else:
        yp_ref, yt_ref, o_ref = refs

    s = pl.program_id(0)   # "parallel" split (megacore on v7x)
    t = pl.program_id(1)   # "arbitrary" tile within the split

    @pl.when(t == 0)
    def _init():
        o_ref[...] = jnp.zeros_like(o_ref)

    d = yp_ref[...].astype(jnp.float32) - yt_ref[...].astype(jnp.float32)
    v = d * d
    if weighted:
        v = jnp.sqrt(v + eps) * w_ref[...].astype(jnp.float32)

    tile_rows, lanes = v.shape
    tile_elems = tile_rows * lanes

    def _accum(vals):
        o_ref[0:1, :] = o_ref[0:1, :] + jnp.sum(vals, axis=0, keepdims=True)

    if may_mask:
        first = (s * nt + t) * tile_elems          # unclamped global offset
        is_full = first + tile_elems <= n_valid

        @pl.when(is_full)
        def _fast():
            _accum(v)

        @pl.when(jnp.logical_not(is_full))
        def _masked():
            row = lax.broadcasted_iota(jnp.int32, v.shape, 0)
            lane = lax.broadcasted_iota(jnp.int32, v.shape, 1)
            gidx = first + row * lanes + lane
            _accum(jnp.where(gidx < n_valid, v, 0.0))
    else:
        _accum(v)


# ---------------------------------------------------------------------------
# wrappers
# ---------------------------------------------------------------------------

def _reduce_call(yp2d, yt2d, w2d, n_valid, eps, tile_rows):
    """Fused partial-sum kernel over the packed slab; returns a scalar f32."""
    rows = yp2d.shape[0]
    it0 = jnp.dtype(yp2d.dtype).itemsize
    it1 = jnp.dtype(yt2d.dtype).itemsize
    row_align = max(_sublanes(yp2d.dtype), _sublanes(yt2d.dtype))

    weighted = w2d is not None
    w_is_full = weighted and w2d.shape[0] != 1

    per_row_bytes = _LANES * (it0 + it1)
    if w_is_full:
        per_row_bytes += _LANES * jnp.dtype(w2d.dtype).itemsize

    if tile_rows is None:
        tr = _round_down(_REDUCE_STEP_BYTES // per_row_bytes, row_align)
        tr = min(tr, 16384)
    else:
        tr = int(tile_rows)
    tr = min(tr, rows)

    blocks_total = pl.cdiv(rows, tr)
    splits = _NUM_SPLITS if blocks_total >= _NUM_SPLITS else 1
    nt = pl.cdiv(blocks_total, splits)
    covered_elems = splits * nt * tr * _LANES
    may_mask = covered_elems != n_valid
    last_block = blocks_total - 1

    def data_map(s, t, nt=nt, last=last_block):
        # Clamp so the (at most one) grid step past the slab re-fetches the
        # last block; its contribution is masked to zero in-kernel.
        return (jnp.minimum(s * nt + t, last), 0)

    in_specs = []
    args = []
    if weighted:
        if w_is_full:
            in_specs.append(pl.BlockSpec((tr, _LANES), data_map))
        else:
            # single resident (1, _LANES) weight tile: ~zero HBM traffic
            in_specs.append(pl.BlockSpec((1, _LANES), lambda s, t: (0, 0)))
        args.append(w2d)
    in_specs += [pl.BlockSpec((tr, _LANES), data_map),
                 pl.BlockSpec((tr, _LANES), data_map)]
    args += [yp2d, yt2d]

    step_bytes = tr * per_row_bytes
    partials = pl.pallas_call(
        functools.partial(_reduce_kernel, eps, n_valid, nt, weighted, may_mask),
        out_shape=jax.ShapeDtypeStruct((splits, 8, _LANES), jnp.float32),
        grid=(splits, nt),
        in_specs=in_specs,
        out_specs=pl.BlockSpec((None, 8, _LANES), lambda s, t: (s, 0, 0)),
        compiler_params=pltpu.CompilerParams(
            dimension_semantics=("parallel", "arbitrary"),
            vmem_limit_bytes=_vmem_limit(step_bytes)),
        cost_estimate=pl.CostEstimate(
            flops=(5 if weighted else 3) * n_valid,
            transcendentals=n_valid if weighted else 0,
            bytes_accessed=int(step_bytes * splits * nt)),
    )(*args)
    # tiny epilogue reduce over splits * 8 * _LANES f32 values
    return jnp.sum(partials)


def rmse_loss(y_pred, y_true, reduction="none", eps=1e-9, *, tile_rows=None):
    """RMSELoss: 'none' -> sqrt((yp-yt)^2+eps); 'sum'/'mean' -> sqrt(. + eps)."""
    assert y_pred.shape == y_true.shape
    orig_shape = y_pred.shape
    eps = float(eps)
    n = int(math.prod(orig_shape)) if orig_shape else 1

    y_pred = _maybe_precast(y_pred)
    y_true = _maybe_precast(y_true)
    it0 = jnp.dtype(y_pred.dtype).itemsize
    it1 = jnp.dtype(y_true.dtype).itemsize
    row_align = max(_sublanes(y_pred.dtype), _sublanes(y_true.dtype))

    yp2d = _pack_2d(y_pred, row_align)
    yt2d = _pack_2d(y_true, row_align)
    rows = yp2d.shape[0]

    if reduction == "none":
        if tile_rows is None:
            tr = _round_down(_ELEM_BLOCK_BYTES // (4 * _LANES), row_align)
        else:
            tr = int(tile_rows)
        tr = min(tr, rows)
        num_tiles = pl.cdiv(rows, tr)
        step_bytes = tr * _LANES * (it0 + it1 + 4)
        out2d = pl.pallas_call(
            functools.partial(_rmse_elementwise_kernel, eps),
            out_shape=jax.ShapeDtypeStruct((rows, _LANES), jnp.float32),
            grid=(num_tiles,),
            in_specs=[pl.BlockSpec((tr, _LANES), lambda i: (i, 0)),
                      pl.BlockSpec((tr, _LANES), lambda i: (i, 0))],
            out_specs=pl.BlockSpec((tr, _LANES), lambda i: (i, 0)),
            compiler_params=pltpu.CompilerParams(
                dimension_semantics=("parallel",),
                vmem_limit_bytes=_vmem_limit(step_bytes)),
            cost_estimate=pl.CostEstimate(
                flops=3 * n, transcendentals=n,
                bytes_accessed=(it0 + it1 + 4) * n),
        )(yp2d, yt2d)
        flat = out2d.reshape(-1)
        if flat.shape[0] != n:
            flat = flat[:n]
        return flat.reshape(orig_shape)

    if reduction in ("sum", "mean"):
        total = _reduce_call(yp2d, yt2d, None, n, eps, tile_rows)
        if reduction == "mean":
            total = total / n  # true element count, not padded count
        return jnp.sqrt(total + eps)

    raise ValueError(f"unsupported reduction: {reduction!r}")


def feedback_loss(y_pred, y_true, reduction="mean", weights=None, eps=1e-9, *,
                  tile_rows=None):
    """FeedbackLoss.forward with loss_name='RMSELoss'.

    No weights: fused sqrt(SUM/MSE + eps) kernel.
    With weights: fully fused sum(w * sqrt((yp-yt)^2 + eps)) kernel; 'mean'
    divides by weights.sum() (sum of the stored weight tensor), matching the
    PyTorch module's `loss.sum() / self.weights.sum()`.
    """
    if weights is None:
        red = "sum" if reduction == "sum" else "mean"
        return rmse_loss(y_pred, y_true, reduction=red, eps=eps,
                         tile_rows=tile_rows)

    assert y_pred.shape == y_true.shape
    orig_shape = y_pred.shape
    eps = float(eps)
    n = int(math.prod(orig_shape)) if orig_shape else 1

    w = jnp.asarray(weights)
    w_sum = jnp.sum(w.astype(jnp.float32))

    y_pred = _maybe_precast(y_pred)
    y_true = _maybe_precast(y_true)
    row_align = max(_sublanes(y_pred.dtype), _sublanes(y_true.dtype))
    yp2d = _pack_2d(y_pred, row_align)
    yt2d = _pack_2d(y_true, row_align)

    # Weight plumbing: with row-major packing, lane j of every slab row maps
    # to last-dim index j % D whenever D divides _LANES, so a 1-D last-dim
    # weight collapses to one resident (1, _LANES) tile.  Anything else is
    # broadcast to the full shape and packed like the inputs.
    last_dim = int(orig_shape[-1]) if len(orig_shape) else 1
    if (w.ndim == 1 and len(orig_shape) >= 1 and int(w.shape[0]) == last_dim
            and _LANES % last_dim == 0):
        w2d = jnp.tile(w.astype(jnp.float32),
                       _LANES // last_dim).reshape(1, _LANES)
    else:
        w_full = jnp.broadcast_to(w, orig_shape).astype(jnp.float32)
        w2d = _pack_2d(w_full, row_align)

    total = _reduce_call(yp2d, yt2d, w2d, n, eps, tile_rows)
    if reduction == "sum":
        return total
    return total / w_sum


if __name__ == "__main__":
    key = jax.random.PRNGKey(0)
    k1, k2 = jax.random.split(key)
    y_pred = jax.random.normal(k1, (2, 4, 16, 16), dtype=jnp.float32)
    y_true = jax.random.normal(k2, (2, 4, 16, 16), dtype=jnp.float32)

    loss_none = rmse_loss(y_pred, y_true, reduction="none")
    loss_sum = rmse_loss(y_pred, y_true, reduction="sum")
    loss_mean = rmse_loss(y_pred, y_true, reduction="mean")
    fb_default = feedback_loss(y_pred, y_true)  # reduction='mean', no weights
    w16 = jnp.arange(1.0, 17.0, dtype=jnp.float32)
    fb_weighted = feedback_loss(y_pred, y_true, reduction="mean", weights=w16)
    fb_weighted_sum = feedback_loss(y_pred, y_true, reduction="sum", weights=w16)
    jax.block_until_ready((loss_none, loss_sum, loss_mean, fb_default,
                           fb_weighted, fb_weighted_sum))

    eps = 1e-9
    ref_none = jnp.sqrt((y_pred - y_true) ** 2 + eps)
    ref_sum = jnp.sqrt(jnp.sum((y_pred - y_true) ** 2) + eps)
    ref_mean = jnp.sqrt(jnp.mean((y_pred - y_true) ** 2) + eps)
    ref_fb_w = (ref_none * w16).sum() / w16.sum()
    ref_fb_ws = (ref_none * w16).sum()
    assert loss_none.shape == y_pred.shape
    assert jnp.allclose(loss_none, ref_none, atol=1e-5)
    assert jnp.allclose(loss_sum, ref_sum, rtol=1e-5)
    assert jnp.allclose(loss_mean, ref_mean, rtol=1e-5)
    assert jnp.allclose(fb_default, ref_mean, rtol=1e-5)
    assert jnp.allclose(fb_weighted, ref_fb_w, rtol=1e-5)
    assert jnp.allclose(fb_weighted_sum, ref_fb_ws, rtol=1e-5)

    # padded (unaligned) slab + full-broadcast fused weight path
    k3, k4 = jax.random.split(k1)
    a = jax.random.normal(k3, (3, 5, 7), dtype=jnp.float32)
    b = jax.random.normal(k4, (3, 5, 7), dtype=jnp.float32)
    odd_none = rmse_loss(a, b, reduction="none")
    odd_mean = rmse_loss(a, b, reduction="mean")
    w7 = jnp.arange(1.0, 8.0, dtype=jnp.float32)
    odd_w = feedback_loss(a, b, reduction="sum", weights=w7)
    jax.block_until_ready((odd_none, odd_mean, odd_w))
    assert jnp.allclose(odd_none, jnp.sqrt((a - b) ** 2 + eps), atol=1e-5)
    assert jnp.allclose(odd_mean, jnp.sqrt(jnp.mean((a - b) ** 2) + eps),
                        rtol=1e-5)
    assert jnp.allclose(odd_w, (jnp.sqrt((a - b) ** 2 + eps) * w7).sum(),
                        rtol=1e-5)

    # multi-tile / two-split reduce + clamped & masked tail, exercised with a
    # deliberately tiny tile size so the test input stays small
    k5, k6 = jax.random.split(k2)
    c = jax.random.normal(k5, (8, 96, 96), dtype=jnp.float32)
    d = jax.random.normal(k6, (8, 96, 96), dtype=jnp.float32)
    small_none = rmse_loss(c, d, reduction="none", tile_rows=32)
    small_mean = rmse_loss(c, d, reduction="mean", tile_rows=32)
    small_sum = rmse_loss(c, d, reduction="sum", tile_rows=32)
    w96 = jnp.linspace(0.5, 2.0, 96, dtype=jnp.float32)
    small_w = feedback_loss(c, d, reduction="mean", weights=w96, tile_rows=32)
    jax.block_until_ready((small_none, small_mean, small_sum, small_w))
    assert jnp.allclose(small_none, jnp.sqrt((c - d) ** 2 + eps), atol=1e-5)
    assert jnp.allclose(small_mean, jnp.sqrt(jnp.mean((c - d) ** 2) + eps),
                        rtol=1e-5)
    assert jnp.allclose(small_sum, jnp.sqrt(jnp.sum((c - d) ** 2) + eps),
                        rtol=1e-4)
    ref_small_w = (jnp.sqrt((c - d) ** 2 + eps) * w96).sum() / w96.sum()
    assert jnp.allclose(small_w, ref_small_w, rtol=1e-4)

    print("KERNEL_OK")
</pallas_src>

<mosaic_0001>
module attributes {stable_mosaic.version = 11 : i64} {
  func.func @_rmse_elementwise_kernel(%arg0: i32, %arg1: memref<8x512xf32, #tpu.memory_space<vmem>>, %arg2: memref<8x512xf32, #tpu.memory_space<vmem>>, %arg3: memref<8x512xf32, #tpu.memory_space<vmem>>) attributes {dimension_semantics = [#tpu.dimension_semantics<parallel>], iteration_bounds = array<i64: 1>, scalar_prefetch = 0 : i64, scratch_operands = 0 : i64, tpu.core_type = #tpu.core_type<tc>, window_params = [{transform_indices = @transform_0, window_bounds = array<i64: 8, 512>}, {transform_indices = @transform_1, window_bounds = array<i64: 8, 512>}, {transform_indices = @transform_2, window_bounds = array<i64: 8, 512>}]} {
    %c0 = arith.constant 0 : index
    %c0_0 = arith.constant 0 : index
    %0 = vector.load %arg1[%c0, %c0_0] : memref<8x512xf32, #tpu.memory_space<vmem>>, vector<8x512xf32>
    %c0_1 = arith.constant 0 : index
    %c0_2 = arith.constant 0 : index
    %1 = vector.load %arg2[%c0_1, %c0_2] : memref<8x512xf32, #tpu.memory_space<vmem>>, vector<8x512xf32>
    %2 = arith.subf %0, %1 : vector<8x512xf32>
    %3 = arith.mulf %2, %2 : vector<8x512xf32>
    %cst = arith.constant 9.99999971E-10 : f32
    %4 = vector.broadcast %cst : f32 to vector<8x512xf32>
    %5 = arith.addf %3, %4 : vector<8x512xf32>
    %6 = math.sqrt %5 : vector<8x512xf32>
    %c0_3 = arith.constant 0 : index
    %c0_4 = arith.constant 0 : index
    %7 = vector.load %arg3[%c0_3, %c0_4] : memref<8x512xf32, #tpu.memory_space<vmem>>, vector<8x512xf32>
    tpu.vector_store %arg3[%c0_3, %c0_4], %6 {strides = array<i32>} : memref<8x512xf32, #tpu.memory_space<vmem>>, vector<8x512xf32>,
    return
  }
  func.func @transform_0(%arg0: i32) -> (i32, i32) {
    %c0_i32 = arith.constant 0 : i32
    %c0_i32_0 = arith.constant 0 : i32
    return %arg0, %c0_i32 : i32, i32
  }
  func.func @transform_1(%arg0: i32) -> (i32, i32) {
    %c0_i32 = arith.constant 0 : i32
    %c0_i32_0 = arith.constant 0 : i32
    return %arg0, %c0_i32 : i32, i32
  }
  func.func @transform_2(%arg0: i32) -> (i32, i32) {
    %c0_i32 = arith.constant 0 : i32
    %c0_i32_0 = arith.constant 0 : i32
    return %arg0, %c0_i32 : i32, i32
  }
}

</mosaic_0001>

<llo_original>
// kernel: tpu_custom_call.1
$region0: #{tpu_custom_call.1}
  #allocation0 [shape = 'u32[]', space=smem, size = 0x4, offset = 0x4, fixed_abs, tag = 'smem constant byte address 0x4 - core index']
  #allocation1 [shape = 'u32[72,128]{1,0:T(1,128)}', space=vmem, size = 0x9000, scoped, tag = 'internal scratch']
  %s0 = inlined_call_operand.hbm [shape: f32[8,512], index: 0, kind: input, shape index: {}]
  %s1 = inlined_call_operand.hbm [shape: f32[8,512], index: 1, kind: input, shape index: {}]
  %s2 = inlined_call_operand.hbm [shape: f32[8,512], index: 2, kind: output, shape index: {}]
  %s3 = sld [smem:[#allocation0]]
  $region26: #{tpu_custom_call.1} parent=0
    _
  %s5 = ssub.s32 1, %s3
  %s6 = scalar_select 0, %s5, %s3
  $region1: #{tpu_custom_call.1} parent=0
    #allocation2 [shape = 'u8[16384]{0}', space=vmem, size = 0x4000, scoped, tag = 'input window, operand 0, single buffered']
    #allocation3 [shape = 's32[1]{0}', space=sflag, size = 0x4, scoped, tag = 'scoped memory for tpu_custom_call.1']
    #allocation4 [shape = 's32[1]{0}', space=sflag, size = 0x4, scoped, tag = 'scoped memory for tpu_custom_call.1']
    #allocation5 [shape = 'u8[16384]{0}', space=vmem, size = 0x4000, scoped, tag = 'input window, operand 1, single buffered']
    #allocation6 [shape = 's32[1]{0}', space=sflag, size = 0x4, scoped, tag = 'scoped memory for tpu_custom_call.1']
    #allocation7 [shape = 'u8[16384]{0}', space=vmem, size = 0x4000, scoped, tag = 'output window, operand 0, single buffered']
    %7 = vsyncpa [#allocation3], 0
    %8 = vsyncpa [#allocation6], 0
    %9 = vsyncpa [#allocation4], 0
    // Predicated region
    $region2: #{tpu_custom_call.1} parent=1 // pred_check
      _
    $region3: #{tpu_custom_call.1} parent=1 // pred_check_branch
      %11 = sbr.rel (0) target = $region5
    $region4: #{tpu_custom_call.1} parent=1 // pred_region
      %13 = vsyncadd [#allocation3], 0
      %s15 = sshll.u32 %s0, 4
      %s16 = int_to_ptr.hbm [resolvable:$true] %s15
      %s17 = sshll.u32 [#allocation2], 4
      %s18 = int_to_ptr.vmem [resolvable:$true] %s17
      %20 = dma.hbm_to_vmem [thread:$0]  %s16, 512, %s18, [#allocation3]
    $region5: #{tpu_custom_call.1} parent=1 // pred_fallthru
      _
    // Predicated region
    $region6: #{tpu_custom_call.1} parent=1 // pred_check
      _
    $region7: #{tpu_custom_call.1} parent=1 // pred_check_branch
      %22 = sbr.rel (0) target = $region9
    $region8: #{tpu_custom_call.1} parent=1 // pred_region
      %24 = vsyncadd [#allocation6], 0
      %s26 = sshll.u32 %s1, 4
      %s27 = int_to_ptr.hbm [resolvable:$true] %s26
      %s28 = sshll.u32 [#allocation5], 4
      %s29 = int_to_ptr.vmem [resolvable:$true] %s28
      %31 = dma.hbm_to_vmem [thread:$0]  %s27, 512, %s29, [#allocation6]
    $region9: #{tpu_custom_call.1} parent=1 // pred_fallthru
      _
    // Predicated region
    $region10: #{tpu_custom_call.1} parent=1 // pred_check
      _
    $region11: #{tpu_custom_call.1} parent=1 // pred_check_branch
      %33 = sbr.rel (0) target = $region13
    $region12: #{tpu_custom_call.1} parent=1 // pred_region
      %35 = dma.done [#allocation3], 512
    $region13: #{tpu_custom_call.1} parent=1 // pred_fallthru
      _
    // Predicated region
    $region14: #{tpu_custom_call.1} parent=1 // pred_check
      _
    $region15: #{tpu_custom_call.1} parent=1 // pred_check_branch
      %37 = sbr.rel (0) target = $region17
    $region16: #{tpu_custom_call.1} parent=1 // pred_region
      %39 = dma.done [#allocation6], 512
    $region17: #{tpu_custom_call.1} parent=1 // pred_fallthru
      _
    %v40 = vld [vmem:[#allocation2] sm:$0xff]
    %v41 = vld [vmem:[#allocation2 + $0x8] sm:$0xff]
    %v42 = vld [vmem:[#allocation2 + $0x10] sm:$0xff]
    %v43 = vld [vmem:[#allocation2 + $0x18] sm:$0xff]
    %v44 = vld [vmem:[#allocation5] sm:$0xff]
    %v45 = vld [vmem:[#allocation5 + $0x8] sm:$0xff]
    %v46 = vld [vmem:[#allocation5 + $0x10] sm:$0xff]
    %v47 = vld [vmem:[#allocation5 + $0x18] sm:$0xff]
    %v48 = vsub.f32 %v40, %v44
    %v49 = vsub.f32 %v41, %v45
    %v50 = vsub.f32 %v42, %v46
    %v51 = vsub.f32 %v43, %v47
    %v52 = vmul.f32 %v48, %v48
    %v53 = vmul.f32 %v49, %v49
    %v54 = vmul.f32 %v50, %v50
    %v55 = vmul.f32 %v51, %v51
    %v56 = vadd.f32 %v52, 1e-09
    %v57 = vadd.f32 %v53, 1e-09
    %v58 = vadd.f32 %v54, 1e-09
    %v59 = vadd.f32 %v55, 1e-09
    %v60 = vrsqrt.pop %v56
    %v61 = vmul.f32 %v60, %v56
    %v62 = vmul.f32 %v61, %v60
    %v63 = vmul.f32 0.5, %v62
    %v64 = vsub.f32 1.5, %v63
    %v65 = vmul.f32 %v60, %v64
    %v66 = vmul.f32 %v56, %v65
    %vm67 = vcmp.eq.f32.partialorder %v56, inf
    %v68 = vsel %vm67, %v56, %v66
    %vm69 = vcmp.eq.f32.partialorder %v56, 0.0
    %v70 = vand.u32 %v56, 2147483648
    %v71 = vsel %vm69, %v70, %v68
    %v72 = vrsqrt.pop %v57
    %v73 = vmul.f32 %v72, %v57
    %v74 = vmul.f32 %v73, %v72
    %v75 = vmul.f32 0.5, %v74
    %v76 = vsub.f32 1.5, %v75
    %v77 = vmul.f32 %v72, %v76
    %v78 = vmul.f32 %v57, %v77
    %vm79 = vcmp.eq.f32.partialorder %v57, inf
    %v80 = vsel %vm79, %v57, %v78
    %vm81 = vcmp.eq.f32.partialorder %v57, 0.0
    %v82 = vand.u32 %v57, 2147483648
    %v83 = vsel %vm81, %v82, %v80
    %v84 = vrsqrt.pop %v58
    %v85 = vmul.f32 %v84, %v58
    %v86 = vmul.f32 %v85, %v84
    %v87 = vmul.f32 0.5, %v86
    %v88 = vsub.f32 1.5, %v87
    %v89 = vmul.f32 %v84, %v88
    %v90 = vmul.f32 %v58, %v89
    %vm91 = vcmp.eq.f32.partialorder %v58, inf
    %v92 = vsel %vm91, %v58, %v90
    %vm93 = vcmp.eq.f32.partialorder %v58, 0.0
    %v94 = vand.u32 %v58, 2147483648
    %v95 = vsel %vm93, %v94, %v92
    %v96 = vrsqrt.pop %v59
    %v97 = vmul.f32 %v96, %v59
    %v98 = vmul.f32 %v97, %v96
    %v99 = vmul.f32 0.5, %v98
    %v100 = vsub.f32 1.5, %v99
    %v101 = vmul.f32 %v96, %v100
    %v102 = vmul.f32 %v59, %v101
    %vm103 = vcmp.eq.f32.partialorder %v59, inf
    %v104 = vsel %vm103, %v59, %v102
    %vm105 = vcmp.eq.f32.partialorder %v59, 0.0
    %v106 = vand.u32 %v59, 2147483648
    %v107 = vsel %vm105, %v106, %v104
    %108 = vst [vmem:[#allocation7] sm:$0xff] %v71
    %109 = vst [vmem:[#allocation7 + $0x8] sm:$0xff] %v83
    %110 = vst [vmem:[#allocation7 + $0x10] sm:$0xff] %v95
    %111 = vst [vmem:[#allocation7 + $0x18] sm:$0xff] %v107
    // Predicated region
    $region18: #{tpu_custom_call.1} parent=1 // pred_check
      _
    $region19: #{tpu_custom_call.1} parent=1 // pred_check_branch
      %113 = sbr.rel (0) target = $region21
    $region20: #{tpu_custom_call.1} parent=1 // pred_region
      %115 = vsyncadd [#allocation4], 0
      %s117 = sshll.u32 [#allocation7], 4
      %s118 = int_to_ptr.vmem [resolvable:$true] %s117
      %s119 = sshll.u32 %s2, 4
      %s120 = int_to_ptr.hbm [resolvable:$true] %s119
      %122 = dma.vmem_to_hbm [thread:$0]  %s118, 512, %s120, [#allocation4]
    $region21: #{tpu_custom_call.1} parent=1 // pred_fallthru
      _
    // Predicated region
    $region22: #{tpu_custom_call.1} parent=1 // pred_check
      _
    $region23: #{tpu_custom_call.1} parent=1 // pred_check_branch
      %124 = sbr.rel (0) target = $region25
    $region24: #{tpu_custom_call.1} parent=1 // pred_region
      %126 = dma.done [#allocation4], 512
    $region25: #{tpu_custom_call.1} parent=1 // pred_fallthru
      _
    %127 = vsyncpa [#allocation3], 1
    %128 = vsyncpa [#allocation6], 1
    %129 = vsyncpa [#allocation4], 1

</llo_original>
